<compile_context>
chip_gen: v7x
topology: tpu7x:2x2x1
jax: 0.10.0
libtpu: 0.0.40
codegen_flags: <defaults>
</compile_context>

<pallas_src>
import jax
import jax.numpy as jnp
from jax.experimental import pallas as pl
from jax.experimental.pallas import tpu as pltpu


# ---------------------------------------------------------------------------
# Batch-major kernel: x tile (TILE_B, 24) -> probs tile (TILE_B, 4)
# ---------------------------------------------------------------------------
def snake_kernel_bm(x_ref, w1_ref, b1_ref, w2_ref, b2_ref, o_ref):
    x = x_ref[...]                                                   # (TILE_B, 24)
    h = jnp.dot(x, w1_ref[...], preferred_element_type=jnp.float32)  # MXU, f32 acc
    h = jnp.maximum(h + b1_ref[...], 0.0)                            # (TILE_B, 16) f32
    logits = jnp.dot(h, w2_ref[...],
                     preferred_element_type=jnp.float32) + b2_ref[...]   # (TILE_B, 4)
    m = jnp.max(logits, axis=-1, keepdims=True)
    e = jnp.exp(logits - m)
    denom = jnp.sum(e, axis=-1, keepdims=True)
    o_ref[...] = (e / denom).astype(o_ref.dtype)                     # exact softmax


# ---------------------------------------------------------------------------
# Feature-major (lane-dense) kernel: x tile (24, TILE_B) -> probs tile (4, TILE_B)
# ---------------------------------------------------------------------------
def snake_kernel_fm(x_ref, w1t_ref, b1_ref, w2t_ref, b2_ref, o_ref):
    x = x_ref[...]                                                       # (24, TILE_B)
    h = jnp.dot(w1t_ref[...], x, preferred_element_type=jnp.float32)     # (16, TILE_B)
    h = jnp.maximum(h + b1_ref[...], 0.0)
    logits = jnp.dot(w2t_ref[...], h,
                     preferred_element_type=jnp.float32) + b2_ref[...]   # (4, TILE_B)
    m = jnp.max(logits, axis=0, keepdims=True)
    e = jnp.exp(logits - m)
    denom = jnp.sum(e, axis=0, keepdims=True)
    o_ref[...] = (e / denom).astype(o_ref.dtype)


def _round_up(n, m):
    return ((n + m - 1) // m) * m


def snake_ai_forward(x, w1, b1, w2, b2, *, tile_b=2048, out_dtype=jnp.float32):
    """Module-shaped path: x (B, 24) -> probs (B, 4).

    x is streamed in its native dtype (store it as bf16 upstream to halve input
    bandwidth); no wrapper pad/cast/transpose. Ragged B handled by partial blocks.
    """
    B, F = x.shape
    assert F == 24
    dt = x.dtype
    w1 = w1.astype(dt)
    w2 = w2.astype(dt)
    b1 = b1.astype(jnp.float32).reshape(1, 16)
    b2 = b2.astype(jnp.float32).reshape(1, 4)

    tile_b = max(8, min(int(tile_b), _round_up(B, 8)))   # sublane multiple, <= batch

    return pl.pallas_call(
        snake_kernel_bm,
        out_shape=jax.ShapeDtypeStruct((B, 4), out_dtype),
        grid=(pl.cdiv(B, tile_b),),
        in_specs=[
            pl.BlockSpec((tile_b, 24), lambda i: (i, 0)),  # x: streamed / double-buffered
            pl.BlockSpec((24, 16),     lambda i: (0, 0)),  # w1: VMEM-resident
            pl.BlockSpec((1, 16),      lambda i: (0, 0)),  # b1: resident
            pl.BlockSpec((16, 4),      lambda i: (0, 0)),  # w2: resident
            pl.BlockSpec((1, 4),       lambda i: (0, 0)),  # b2: resident
        ],
        out_specs=pl.BlockSpec((tile_b, 4), lambda i: (i, 0)),
        compiler_params=pltpu.CompilerParams(
            dimension_semantics=("parallel",),   # v7x: shard batch tiles across both TCs
        ),
    )(x, w1, b1, w2, b2)


def snake_ai_forward_fm(x_fm, w1, b1, w2, b2, *, tile_b=4096, out_dtype=jnp.float32):
    """Lane-dense fast path: feature-major x_fm (24, B) -> probs (4, B).

    Preferred when the producer/consumer already work in feature-major layout
    (a wrapper-side transpose would cost an extra HBM pass over x and eat the gain).
    Blocks (24, TILE_B) / (4, TILE_B) are 128-lane dense -> full vst stores, ~5x
    less VMEM padding than the batch-major layout.
    """
    F, B = x_fm.shape
    assert F == 24
    dt = x_fm.dtype
    w1t = jnp.transpose(w1).astype(dt)               # (16, 24) tiny, resident
    w2t = jnp.transpose(w2).astype(dt)               # (4, 16)
    b1c = b1.astype(jnp.float32).reshape(16, 1)
    b2c = b2.astype(jnp.float32).reshape(4, 1)

    tile_b = max(128, min(int(tile_b), _round_up(B, 128)))  # lane multiple

    return pl.pallas_call(
        snake_kernel_fm,
        out_shape=jax.ShapeDtypeStruct((4, B), out_dtype),
        grid=(pl.cdiv(B, tile_b),),
        in_specs=[
            pl.BlockSpec((24, tile_b), lambda i: (0, i)),  # x: streamed, lane-dense
            pl.BlockSpec((16, 24),     lambda i: (0, 0)),  # w1^T: resident
            pl.BlockSpec((16, 1),      lambda i: (0, 0)),  # b1: resident
            pl.BlockSpec((4, 16),      lambda i: (0, 0)),  # w2^T: resident
            pl.BlockSpec((4, 1),       lambda i: (0, 0)),  # b2: resident
        ],
        out_specs=pl.BlockSpec((4, tile_b), lambda i: (0, i)),
        compiler_params=pltpu.CompilerParams(
            dimension_semantics=("parallel",),
        ),
    )(x_fm, w1t, b1c, w2t, b2c)


def init_params(key):
    """Deterministic init mimicking PyTorch nn.Linear default (U(-1/sqrt(fan_in), ..))."""
    k1, k2, k3, k4 = jax.random.split(key, 4)
    bound1 = 1.0 / jnp.sqrt(24.0)
    bound2 = 1.0 / jnp.sqrt(16.0)
    # stored as (in, out) so the batch-major kernel computes x @ W
    w1 = jax.random.uniform(k1, (24, 16), jnp.float32, -bound1, bound1)
    b1 = jax.random.uniform(k2, (16,),    jnp.float32, -bound1, bound1)
    w2 = jax.random.uniform(k3, (16, 4),  jnp.float32, -bound2, bound2)
    b2 = jax.random.uniform(k4, (4,),     jnp.float32, -bound2, bound2)
    return w1, b1, w2, b2


def reference_forward(x, w1, b1, w2, b2):
    h = jnp.maximum(x @ w1 + b1, 0.0)
    logits = h @ w2 + b2
    return jax.nn.softmax(logits, axis=-1)


if __name__ == "__main__":
    key = jax.random.PRNGKey(0)
    kx, kp = jax.random.split(key)
    w1, b1, w2, b2 = init_params(kp)

    # ---- (1) small f32 batch-major check (module-consistent shapes: 24 -> 4) ----
    B1 = 8
    x1 = jax.random.normal(kx, (B1, 24), jnp.float32)
    out1 = jax.block_until_ready(snake_ai_forward(x1, w1, b1, w2, b2))
    ref1 = reference_forward(x1, w1, b1, w2, b2)
    assert out1.shape == (B1, 4)
    assert jnp.allclose(out1, ref1, atol=2e-3, rtol=2e-3)
    assert jnp.allclose(jnp.sum(out1, axis=-1), jnp.ones((B1,)), atol=1e-5)

    # ---- (2) ragged batch, batch-major, multiple grid steps, no wrapper pad ----
    B2 = 300
    x2 = jax.random.normal(jax.random.fold_in(kx, 1), (B2, 24), jnp.float32)
    out2 = jax.block_until_ready(snake_ai_forward(x2, w1, b1, w2, b2, tile_b=256))
    ref2 = reference_forward(x2, w1, b1, w2, b2)
    assert out2.shape == (B2, 4)
    assert jnp.allclose(out2, ref2, atol=2e-3, rtol=2e-3)
    assert jnp.allclose(jnp.sum(out2, axis=-1), jnp.ones((B2,)), atol=1e-5)

    # ---- (3) lane-dense feature-major fast path, producer-supplied bf16 x ----
    B3 = 300
    x3_f32 = jax.random.normal(jax.random.fold_in(kx, 2), (B3, 24), jnp.float32)
    x3_fm = jnp.transpose(x3_f32).astype(jnp.bfloat16)   # layout+dtype chosen by producer
    out3 = jax.block_until_ready(snake_ai_forward_fm(x3_fm, w1, b1, w2, b2))
    ref3 = reference_forward(x3_f32, w1, b1, w2, b2)
    assert out3.shape == (4, B3)
    assert jnp.allclose(jnp.transpose(out3), ref3, atol=2e-2, rtol=2e-2)   # bf16 operands
    assert jnp.allclose(jnp.sum(out3, axis=0), jnp.ones((B3,)), atol=1e-3)

    print("KERNEL_OK")
</pallas_src>

<mosaic_0001>
module attributes {stable_mosaic.version = 11 : i64} {
  func.func @snake_kernel_bm(%arg0: i32, %arg1: memref<8x24xf32, #tpu.memory_space<vmem>>, %arg2: memref<24x16xf32, #tpu.memory_space<vmem>>, %arg3: memref<1x16xf32, #tpu.memory_space<vmem>>, %arg4: memref<16x4xf32, #tpu.memory_space<vmem>>, %arg5: memref<1x4xf32, #tpu.memory_space<vmem>>, %arg6: memref<8x4xf32, #tpu.memory_space<vmem>>) attributes {dimension_semantics = [#tpu.dimension_semantics<parallel>], iteration_bounds = array<i64: 1>, scalar_prefetch = 0 : i64, scratch_operands = 0 : i64, tpu.core_type = #tpu.core_type<tc>, window_params = [{transform_indices = @transform_0, window_bounds = array<i64: 8, 24>}, {pipeline_mode = #tpu.pipeline_mode<synchronous>, transform_indices = @transform_1, window_bounds = array<i64: 24, 16>}, {pipeline_mode = #tpu.pipeline_mode<synchronous>, transform_indices = @transform_2, window_bounds = array<i64: 1, 16>}, {pipeline_mode = #tpu.pipeline_mode<synchronous>, transform_indices = @transform_3, window_bounds = array<i64: 16, 4>}, {pipeline_mode = #tpu.pipeline_mode<synchronous>, transform_indices = @transform_4, window_bounds = array<i64: 1, 4>}, {transform_indices = @transform_5, window_bounds = array<i64: 8, 4>}]} {
    %c0 = arith.constant 0 : index
    %c0_0 = arith.constant 0 : index
    %0 = vector.load %arg1[%c0, %c0_0] : memref<8x24xf32, #tpu.memory_space<vmem>>, vector<8x24xf32>
    %c0_1 = arith.constant 0 : index
    %c0_2 = arith.constant 0 : index
    %1 = vector.load %arg2[%c0_1, %c0_2] : memref<24x16xf32, #tpu.memory_space<vmem>>, vector<24x16xf32>
    %cst = arith.constant dense<0.000000e+00> : vector<8x16xf32>
    %2 = tpu.matmul %0, %1, %cst {dimension_numbers = #tpu.dot_dimension_numbers<[1], [0], [0], [1], [0, 0, 1, 1], [], []>} : vector<8x24xf32>, vector<24x16xf32>, vector<8x16xf32> -> vector<8x16xf32>
    %c0_3 = arith.constant 0 : index
    %c0_4 = arith.constant 0 : index
    %3 = vector.load %arg3[%c0_3, %c0_4] : memref<1x16xf32, #tpu.memory_space<vmem>>, vector<1x16xf32>
    %4 = vector.broadcast %3 : vector<1x16xf32> to vector<8x16xf32>
    %5 = arith.addf %2, %4 : vector<8x16xf32>
    %cst_5 = arith.constant 0.000000e+00 : f32
    %6 = vector.broadcast %cst_5 : f32 to vector<8x16xf32>
    %7 = arith.maximumf %5, %6 : vector<8x16xf32>
    %c0_6 = arith.constant 0 : index
    %c0_7 = arith.constant 0 : index
    %8 = vector.load %arg4[%c0_6, %c0_7] : memref<16x4xf32, #tpu.memory_space<vmem>>, vector<16x4xf32>
    %cst_8 = arith.constant dense<0.000000e+00> : vector<8x4xf32>
    %9 = tpu.matmul %7, %8, %cst_8 {dimension_numbers = #tpu.dot_dimension_numbers<[1], [0], [0], [1], [0, 0, 1, 1], [], []>} : vector<8x16xf32>, vector<16x4xf32>, vector<8x4xf32> -> vector<8x4xf32>
    %c0_9 = arith.constant 0 : index
    %c0_10 = arith.constant 0 : index
    %10 = vector.load %arg5[%c0_9, %c0_10] : memref<1x4xf32, #tpu.memory_space<vmem>>, vector<1x4xf32>
    %11 = vector.broadcast %10 : vector<1x4xf32> to vector<8x4xf32>
    %12 = arith.addf %9, %11 : vector<8x4xf32>
    %cst_11 = arith.constant dense<0xFF800000> : vector<8xf32>
    %13 = vector.multi_reduction <maximumf>, %12, %cst_11 [1] : vector<8x4xf32> to vector<8xf32>
    %14 = vector.shape_cast %13 : vector<8xf32> to vector<8x1xf32>
    %15 = vector.broadcast %14 : vector<8x1xf32> to vector<8x4xf32>
    %16 = arith.subf %12, %15 : vector<8x4xf32>
    %17 = math.exp %16 : vector<8x4xf32>
    %cst_12 = arith.constant dense<0.000000e+00> : vector<8xf32>
    %18 = vector.multi_reduction <add>, %17, %cst_12 [1] : vector<8x4xf32> to vector<8xf32>
    %19 = vector.shape_cast %18 : vector<8xf32> to vector<8x1xf32>
    %20 = vector.broadcast %19 : vector<8x1xf32> to vector<8x4xf32>
    %21 = arith.divf %17, %20 : vector<8x4xf32>
    %c0_13 = arith.constant 0 : index
    %c0_14 = arith.constant 0 : index
    %22 = vector.load %arg6[%c0_13, %c0_14] : memref<8x4xf32, #tpu.memory_space<vmem>>, vector<8x4xf32>
    tpu.vector_store %arg6[%c0_13, %c0_14], %21 {strides = array<i32>} : memref<8x4xf32, #tpu.memory_space<vmem>>, vector<8x4xf32>,
    return
  }
  func.func @transform_0(%arg0: i32) -> (i32, i32) {
    %c0_i32 = arith.constant 0 : i32
    %c0_i32_0 = arith.constant 0 : i32
    return %arg0, %c0_i32 : i32, i32
  }
  func.func @transform_1(%arg0: i32) -> (i32, i32) {
    %c0_i32 = arith.constant 0 : i32
    %c0_i32_0 = arith.constant 0 : i32
    %c0_i32_1 = arith.constant 0 : i32
    return %c0_i32, %c0_i32_0 : i32, i32
  }
  func.func @transform_2(%arg0: i32) -> (i32, i32) {
    %c0_i32 = arith.constant 0 : i32
    %c0_i32_0 = arith.constant 0 : i32
    %c0_i32_1 = arith.constant 0 : i32
    return %c0_i32, %c0_i32_0 : i32, i32
  }
  func.func @transform_3(%arg0: i32) -> (i32, i32) {
    %c0_i32 = arith.constant 0 : i32
    %c0_i32_0 = arith.constant 0 : i32
    %c0_i32_1 = arith.constant 0 : i32
    return %c0_i32, %c0_i32_0 : i32, i32
  }
  func.func @transform_4(%arg0: i32) -> (i32, i32) {
    %c0_i32 = arith.constant 0 : i32
    %c0_i32_0 = arith.constant 0 : i32
    %c0_i32_1 = arith.constant 0 : i32
    return %c0_i32, %c0_i32_0 : i32, i32
  }
  func.func @transform_5(%arg0: i32) -> (i32, i32) {
    %c0_i32 = arith.constant 0 : i32
    %c0_i32_0 = arith.constant 0 : i32
    return %arg0, %c0_i32 : i32, i32
  }
}

</mosaic_0001>

<llo_original>
// kernel: tpu_custom_call.1
$region0: #{tpu_custom_call.1}
  #allocation0 [shape = 'u32[]', space=smem, size = 0x4, offset = 0x4, fixed_abs, tag = 'smem constant byte address 0x4 - core index']
  #allocation1 [shape = 'u32[144,128]{1,0:T(1,128)}', space=vmem, size = 0x12000, scoped, tag = 'internal scratch']
  %s0 = inlined_call_operand.vmem [shape: f32[8,24], index: 0, kind: input, shape index: {}]
  %s1 = inlined_call_operand.vmem [shape: f32[24,16], index: 1, kind: input, shape index: {}]
  %s2 = inlined_call_operand.vmem [shape: f32[1,16], index: 2, kind: input, shape index: {}]
  %s3 = inlined_call_operand.vmem [shape: f32[16,4], index: 3, kind: input, shape index: {}]
  %s4 = inlined_call_operand.vmem [shape: f32[1,4], index: 4, kind: input, shape index: {}]
  %s5 = inlined_call_operand.vmem [shape: f32[8,4], index: 5, kind: output, shape index: {}]
  %s6 = sld [smem:[#allocation0]]
  $region30: #{tpu_custom_call.1} parent=0
    _
  %s8 = ssub.s32 1, %s6
  %s9 = scalar_select 0, %s8, %s6
  // Predicated region
  $region2: #{tpu_custom_call.1} parent=0 // pred_check
    _
  $region3: #{tpu_custom_call.1} parent=0 // pred_check_branch
    %11 = sbr.rel (0) target = $region5
  $region4: #{tpu_custom_call.1} parent=0 // pred_region
    _
  $region5: #{tpu_custom_call.1} parent=0 // pred_fallthru
    _
  // Predicated region
  $region6: #{tpu_custom_call.1} parent=0 // pred_check
    _
  $region7: #{tpu_custom_call.1} parent=0 // pred_check_branch
    %13 = sbr.rel (0) target = $region9
  $region8: #{tpu_custom_call.1} parent=0 // pred_region
    _
  $region9: #{tpu_custom_call.1} parent=0 // pred_fallthru
    _
  // Predicated region
  $region10: #{tpu_custom_call.1} parent=0 // pred_check
    _
  $region11: #{tpu_custom_call.1} parent=0 // pred_check_branch
    %15 = sbr.rel (0) target = $region13
  $region12: #{tpu_custom_call.1} parent=0 // pred_region
    _
  $region13: #{tpu_custom_call.1} parent=0 // pred_fallthru
    _
  // Predicated region
  $region14: #{tpu_custom_call.1} parent=0 // pred_check
    _
  $region15: #{tpu_custom_call.1} parent=0 // pred_check_branch
    %17 = sbr.rel (0) target = $region17
  $region16: #{tpu_custom_call.1} parent=0 // pred_region
    _
  $region17: #{tpu_custom_call.1} parent=0 // pred_fallthru
    _
  // Predicated region
  $region18: #{tpu_custom_call.1} parent=0 // pred_check
    _
  $region19: #{tpu_custom_call.1} parent=0 // pred_check_branch
    %19 = sbr.rel (0) target = $region21
  $region20: #{tpu_custom_call.1} parent=0 // pred_region
    _
  $region21: #{tpu_custom_call.1} parent=0 // pred_fallthru
    _
  %v20 = vld [vmem:[%s0] sm:$0xff]
  %v21 = vld [vmem:[%s1] sm:$0xff]
  %v22 = vld [vmem:[%s1 + $0x8] sm:$0xff]
  %v23 = vld [vmem:[%s1 + $0x10] sm:$0xff]
  %v24 = vld [vmem:[%s2] sm:$0x1]
  %v26 = vlaneseq
  %v27 = vshrl.u32 %v26, 7
  %v28 = vsub.s32 0, %v27
  %v29 = vrot.slane %v24, %v28
  %vm31 = vcmask 195584
  %v33 = vsel %vm31, %v20, 0
  %35 = vmatprep.subr.mxu0 0.0
  %36 = vmatpush1.msra.mxu0 %v21
  %37 = vmatprep.subr.mxu0 0.0
  %38 = vmatpush1.msra.mxu0 %v22
  %39 = vmatprep.subr.mxu0 0.0
  %40 = vmatpush1.msra.mxu0 %v23
  %41 = vmatprep.subr.mxu0 0.0
  %42 = vmatpush1.msra.mxu0 0.0
  %43 = vmatprep.subr.mxu0 0.0
  %44 = vmatpush1.msra.mxu0 0.0
  %45 = vmatprep.subr.mxu0 0.0
  %46 = vmatpush1.msra.mxu0 0.0
  %47 = vmatprep.subr.mxu0 0.0
  %48 = vmatpush1.msra.mxu0 0.0
  %49 = vmatprep.subr.mxu0 0.0
  %50 = vmatpush1.msra.mxu0 0.0
  %51 = vmatprep.subr.mxu0 0.0
  %52 = vmatpush1.msra.mxu0 0.0
  %53 = vmatprep.subr.mxu0 0.0
  %54 = vmatpush1.msra.mxu0 0.0
  %55 = vmatprep.subr.mxu0 0.0
  %56 = vmatpush1.msra.mxu0 0.0
  %57 = vmatprep.subr.mxu0 0.0
  %58 = vmatpush1.msra.mxu0 0.0
  %59 = vmatprep.subr.mxu0 0.0
  %60 = vmatpush1.msra.mxu0 0.0
  %61 = vmatprep.subr.mxu0 0.0
  %62 = vmatpush1.msra.mxu0 0.0
  %63 = vmatprep.subr.mxu0 0.0
  %64 = vmatpush1.msra.mxu0 0.0
  %65 = vmatprep.subr.mxu0 0.0
  %66 = vmatpush1.msra.mxu0 0.0
  %67 = vmatprep.subr.mxu0 0.0
  %68 = vmatpush1.msra.mxu0 0.0
  %69 = vmatprep.subr.mxu0 0.0
  %70 = vmatpush1.msra.mxu0 0.0
  %71 = vmatprep.subr.mxu0 0.0
  %72 = vmatpush1.msra.mxu0 0.0
  %73 = vmatprep.subr.mxu0 0.0
  %74 = vmatpush1.msra.mxu0 0.0
  %75 = vmatprep.subr.mxu0 0.0
  %76 = vmatpush1.msra.mxu0 0.0
  %77 = vmatprep.subr.mxu0 0.0
  %78 = vmatpush1.msra.mxu0 0.0
  %79 = vmatprep.subr.mxu0 0.0
  %80 = vmatpush1.msra.mxu0 0.0
  %81 = vmatprep.subr.mxu0 0.0
  %82 = vmatpush1.msra.mxu0 0.0
  %83 = vmatprep.subr.mxu0 0.0
  %84 = vmatpush1.msra.mxu0 0.0
  %85 = vmatprep.subr.mxu0 0.0
  %86 = vmatpush1.msra.mxu0 0.0
  %87 = vmatprep.subr.mxu0 0.0
  %88 = vmatpush1.msra.mxu0 0.0
  %89 = vmatprep.subr.mxu0 0.0
  %90 = vmatpush1.msra.mxu0 0.0
  %91 = vmatprep.subr.mxu0 0.0
  %92 = vmatpush1.msra.mxu0 0.0
  %93 = vmatprep.subr.mxu0 0.0
  %94 = vmatpush1.msra.mxu0 0.0
  %95 = vmatprep.subr.mxu0 0.0
  %96 = vmatpush1.msra.mxu0 0.0
  %97 = vmatprep.subr.mxu0 0.0
  %98 = vmatpush1.msra.mxu0 0.0
  %99 = vmatprep.mubr.f32.mxu0 0.0
  %100 = vmatmul.mubr.f32.gmra.mrb[0].mxu0 %v33
  %v101 = vpop.f32.mrb[0].mxu0
  %v102 = vadd.f32 %v29, %v101
  %v103 = vpop.f32.mrb[0].mxu0
  %104 = vdwg.mxu0
  %v105 = vmax.f32 %v102, 0.0
  %v106 = vld [vmem:[%s3] sm:$0xff]
  %v107 = vld [vmem:[%s3 + $0x8] sm:$0xff]
  %v108 = vld [vmem:[%s4] sm:$0x1]
  %v110 = vlaneseq
  %v111 = vshrl.u32 %v110, 7
  %v112 = vsub.s32 0, %v111
  %v113 = vrot.slane %v108, %v112
  %vm115 = vcmask 130048
  %v117 = vsel %vm115, %v105, 0
  %119 = vmatprep.subr.mxu0 0.0
  %120 = vmatpush1.msra.mxu0 %v106
  %121 = vmatprep.subr.mxu0 0.0
  %122 = vmatpush1.msra.mxu0 %v107
  %123 = vmatprep.subr.mxu0 0.0
  %124 = vmatpush1.msra.mxu0 0.0
  %125 = vmatprep.subr.mxu0 0.0
  %126 = vmatpush1.msra.mxu0 0.0
  %127 = vmatprep.subr.mxu0 0.0
  %128 = vmatpush1.msra.mxu0 0.0
  %129 = vmatprep.subr.mxu0 0.0
  %130 = vmatpush1.msra.mxu0 0.0
  %131 = vmatprep.subr.mxu0 0.0
  %132 = vmatpush1.msra.mxu0 0.0
  %133 = vmatprep.subr.mxu0 0.0
  %134 = vmatpush1.msra.mxu0 0.0
  %135 = vmatprep.subr.mxu0 0.0
  %136 = vmatpush1.msra.mxu0 0.0
  %137 = vmatprep.subr.mxu0 0.0
  %138 = vmatpush1.msra.mxu0 0.0
  %139 = vmatprep.subr.mxu0 0.0
  %140 = vmatpush1.msra.mxu0 0.0
  %141 = vmatprep.subr.mxu0 0.0
  %142 = vmatpush1.msra.mxu0 0.0
  %143 = vmatprep.subr.mxu0 0.0
  %144 = vmatpush1.msra.mxu0 0.0
  %145 = vmatprep.subr.mxu0 0.0
  %146 = vmatpush1.msra.mxu0 0.0
  %147 = vmatprep.subr.mxu0 0.0
  %148 = vmatpush1.msra.mxu0 0.0
  %149 = vmatprep.subr.mxu0 0.0
  %150 = vmatpush1.msra.mxu0 0.0
  %151 = vmatprep.subr.mxu0 0.0
  %152 = vmatpush1.msra.mxu0 0.0
  %153 = vmatprep.subr.mxu0 0.0
  %154 = vmatpush1.msra.mxu0 0.0
  %155 = vmatprep.subr.mxu0 0.0
  %156 = vmatpush1.msra.mxu0 0.0
  %157 = vmatprep.subr.mxu0 0.0
  %158 = vmatpush1.msra.mxu0 0.0
  %159 = vmatprep.subr.mxu0 0.0
  %160 = vmatpush1.msra.mxu0 0.0
  %161 = vmatprep.subr.mxu0 0.0
  %162 = vmatpush1.msra.mxu0 0.0
  %163 = vmatprep.subr.mxu0 0.0
  %164 = vmatpush1.msra.mxu0 0.0
  %165 = vmatprep.subr.mxu0 0.0
  %166 = vmatpush1.msra.mxu0 0.0
  %167 = vmatprep.subr.mxu0 0.0
  %168 = vmatpush1.msra.mxu0 0.0
  %169 = vmatprep.subr.mxu0 0.0
  %170 = vmatpush1.msra.mxu0 0.0
  %171 = vmatprep.subr.mxu0 0.0
  %172 = vmatpush1.msra.mxu0 0.0
  %173 = vmatprep.subr.mxu0 0.0
  %174 = vmatpush1.msra.mxu0 0.0
  %175 = vmatprep.subr.mxu0 0.0
  %176 = vmatpush1.msra.mxu0 0.0
  %177 = vmatprep.subr.mxu0 0.0
  %178 = vmatpush1.msra.mxu0 0.0
  %179 = vmatprep.subr.mxu0 0.0
  %180 = vmatpush1.msra.mxu0 0.0
  %181 = vmatprep.subr.mxu0 0.0
  %182 = vmatpush1.msra.mxu0 0.0
  %183 = vmatprep.mubr.f32.mxu0 0.0
  %184 = vmatmul.mubr.f32.gmra.mrb[0].mxu0 %v117
  %v185 = vpop.f32.mrb[0].mxu0
  %v186 = vadd.f32 %v113, %v185
  %v187 = vpop.f32.mrb[0].mxu0
  %188 = vdwg.mxu0
  %vm189 = vcmask 31744
  %v190 = vsel %vm189, %v186, -inf
  %191 = vmax.xlane.f32.xlu0 %v190
  %v192 = vpop.xlane.xlu0 %191
  %v193 = vsub.f32 %v186, %v192
  %v194 = vmul.f32 %v193, 1.442695
  %v195 = vpow.pop %v194
  %v196 = vsel %vm189, %v195, 0.0
  %197 = vadd.xlane.f32.xlu0 %v196
  %v198 = vpop.xlane.xlu0 %197
  %v199 = vrcp.pop %v198
  %v200 = vmul.f32 %v195, %v199
  %201 = vst.msk [vmem:[%s5] sm:$0xff] %vm189, %v200
  // Predicated region
  $region22: #{tpu_custom_call.1} parent=0 // pred_check
    _
  $region23: #{tpu_custom_call.1} parent=0 // pred_check_branch
    %203 = sbr.rel (0) target = $region25
  $region24: #{tpu_custom_call.1} parent=0 // pred_region
    _
  $region25: #{tpu_custom_call.1} parent=0 // pred_fallthru
    _
  // Predicated region
  $region26: #{tpu_custom_call.1} parent=0 // pred_check
    _
  $region27: #{tpu_custom_call.1} parent=0 // pred_check_branch
    %205 = sbr.rel (0) target = $region29
  $region28: #{tpu_custom_call.1} parent=0 // pred_region
    _
  $region29: #{tpu_custom_call.1} parent=0 // pred_fallthru
    _

</llo_original>
